<compile_context>
chip_gen: v5e
topology: v5e:2x2
jax: 0.10.0
libtpu: 0.0.40
codegen_flags: <defaults>
</compile_context>

<pallas_src>
import functools

import jax
import jax.numpy as jnp
from jax.experimental import pallas as pl
from jax.experimental.pallas import tpu as pltpu

IN_DIM = 3
HID_DIM = 10
OUT_DIM = 9

HID_PAD = 16    # hidden/output rows padded to 2 f32 sublane groups (VMEM only)
LANE = 128      # lane granularity: batch tile is a multiple of this (or == B)
TILE_B = 32768  # default batch tile (lanes per grid step)


def _round_up(n, m):
    return ((n + m - 1) // m) * m


def _mlp_kernel(x_ref, w1_ref, b1_ref, w2_ref, b2_ref, o_ref):
    # Feature-major tiles (features on sublanes, batch on lanes):
    #   x_ref : (IN_DIM, tb)        one lane-dense row per input feature
    #   w1_ref: (HID_PAD, IN_DIM)   w1_ref[j, k] = W1[k, j]  (zero-padded j>=10)
    #   b1_ref: (HID_PAD, 1)
    #   w2_ref: (HID_PAD, HID_PAD)  w2_ref[m, j] = W2[j, m]  (zero-padded)
    #   b2_ref: (HID_PAD, 1)
    #   o_ref : (OUT_DIM, tb)
    x = x_ref[...]
    w1 = w1_ref[...]
    w2 = w2_ref[...]

    # Layer 1: h = relu(W1^T x + b1), K=3 unrolled VPU outer products.
    h = (b1_ref[...]
         + w1[:, 0:1] * x[0:1, :]
         + w1[:, 1:2] * x[1:2, :]
         + w1[:, 2:3] * x[2:3, :])            # (HID_PAD, tb)
    h = jnp.maximum(h, 0.0)

    # Layer 2: y = W2^T h + b2, K=10 unrolled VPU outer products (no MXU).
    y = b2_ref[...] + w2[:, 0:1] * h[0:1, :]
    for j in range(1, HID_DIM):
        y = y + w2[:, j:j + 1] * h[j:j + 1, :]

    o_ref[...] = y[:OUT_DIM, :].astype(o_ref.dtype)


def prepare_params(w1, b1, w2, b2):
    """Pad weights/biases once, feature-major. Weights are given as [in, out]."""
    w1p = jnp.zeros((HID_PAD, IN_DIM), jnp.float32).at[:HID_DIM, :].set(w1.T)
    b1p = jnp.zeros((HID_PAD, 1), jnp.float32).at[:HID_DIM, 0].set(b1)
    w2p = jnp.zeros((HID_PAD, HID_PAD), jnp.float32).at[:OUT_DIM, :HID_DIM].set(w2.T)
    b2p = jnp.zeros((HID_PAD, 1), jnp.float32).at[:OUT_DIM, 0].set(b2)
    return w1p, b1p, w2p, b2p


def _pick_tile(B, tile_b):
    # >=2 grid steps when B allows it (megacore sharding on v7x), lane-aligned.
    half = _round_up(pl.cdiv(B, 2), LANE)
    tb = max(LANE, min(_round_up(tile_b, LANE), half))
    if tb >= B:
        tb = B  # single full-extent block (any size is legal as a full block)
    return tb


@functools.partial(jax.jit, static_argnames=("tile_b",))
def sqn_forward_fm(x_fm, w1p, b1p, w2p, b2p, *, tile_b=TILE_B):
    """Feature-major hot path: x_fm [IN_DIM, B] f32 -> [OUT_DIM, B] f32."""
    B = x_fm.shape[1]
    tb = _pick_tile(B, tile_b)
    grid = (pl.cdiv(B, tb),)

    cost = pl.CostEstimate(
        flops=2 * B * (IN_DIM * HID_DIM + HID_DIM * OUT_DIM),
        transcendentals=0,
        bytes_accessed=4 * B * (IN_DIM + OUT_DIM)
        + 4 * (HID_PAD * IN_DIM + HID_PAD + HID_PAD * HID_PAD + HID_PAD),
    )

    return pl.pallas_call(
        _mlp_kernel,
        out_shape=jax.ShapeDtypeStruct((OUT_DIM, B), jnp.float32),
        grid=grid,
        in_specs=[
            pl.BlockSpec((IN_DIM, tb), lambda i: (0, i)),        # lane-dense x
            pl.BlockSpec((HID_PAD, IN_DIM), lambda i: (0, 0)),   # resident W1^T
            pl.BlockSpec((HID_PAD, 1), lambda i: (0, 0)),        # resident b1
            pl.BlockSpec((HID_PAD, HID_PAD), lambda i: (0, 0)),  # resident W2^T
            pl.BlockSpec((HID_PAD, 1), lambda i: (0, 0)),        # resident b2
        ],
        out_specs=pl.BlockSpec((OUT_DIM, tb), lambda i: (0, i)),  # lane-dense y
        compiler_params=pltpu.CompilerParams(
            dimension_semantics=("parallel",),
            vmem_limit_bytes=32 * 1024 * 1024,
        ),
        cost_estimate=cost,
    )(x_fm, w1p, b1p, w2p, b2p)


@functools.partial(jax.jit, static_argnames=("tile_b",))
def sqn_forward(x, w1p, b1p, w2p, b2p, *, tile_b=TILE_B):
    """Module-semantics wrapper: x [B, 3] f32 -> [B, 9] f32 (same math as SQN).

    The transposes are thin boundary shims; keep data feature-major end-to-end
    (sqn_forward_fm) to avoid them entirely.
    """
    y_fm = sqn_forward_fm(jnp.transpose(x), w1p, b1p, w2p, b2p, tile_b=tile_b)
    return jnp.transpose(y_fm)


def init_params(key):
    """Deterministic init mimicking nn.Linear's uniform(-1/sqrt(fan_in), ...)."""
    k1, k2, k3, k4 = jax.random.split(key, 4)
    bound1 = 1.0 / jnp.sqrt(IN_DIM)
    bound2 = 1.0 / jnp.sqrt(HID_DIM)
    # Stored as [in, out] (transposed vs. PyTorch's [out, in]).
    w1 = jax.random.uniform(k1, (IN_DIM, HID_DIM), jnp.float32, -bound1, bound1)
    b1 = jax.random.uniform(k2, (HID_DIM,), jnp.float32, -bound1, bound1)
    w2 = jax.random.uniform(k3, (HID_DIM, OUT_DIM), jnp.float32, -bound2, bound2)
    b2 = jax.random.uniform(k4, (OUT_DIM,), jnp.float32, -bound2, bound2)
    return w1, b1, w2, b2


def _reference(x, w1, b1, w2, b2):
    hi = jax.lax.Precision.HIGHEST
    h = jnp.maximum(jnp.dot(x, w1, precision=hi) + b1, 0.0)
    return jnp.dot(h, w2, precision=hi) + b2


if __name__ == "__main__":
    key = jax.random.PRNGKey(0)
    kx, kp = jax.random.split(key)

    w1, b1, w2, b2 = init_params(kp)
    params = prepare_params(w1, b1, w2, b2)   # padded once, reused

    # Small batch (module-implied shape): single full-extent block.
    x_small = jax.random.normal(kx, (2, IN_DIM), jnp.float32)
    y_small = jax.block_until_ready(sqn_forward(x_small, *params))
    ref_small = _reference(x_small, w1, b1, w2, b2)
    assert y_small.shape == (2, OUT_DIM)
    assert jnp.allclose(y_small, ref_small, atol=1e-4, rtol=1e-4), \
        "small-batch mismatch vs reference"

    # Larger batch with a small tile: multi-step grid + ragged last block.
    x_big = jax.random.normal(kx, (300, IN_DIM), jnp.float32)
    y_big = jax.block_until_ready(sqn_forward(x_big, *params, tile_b=128))
    ref_big = _reference(x_big, w1, b1, w2, b2)
    assert y_big.shape == (300, OUT_DIM)
    assert jnp.allclose(y_big, ref_big, atol=1e-4, rtol=1e-4), \
        "large-batch mismatch vs reference"

    print("KERNEL_OK")
</pallas_src>

<mosaic_0001>
module attributes {stable_mosaic.version = 11 : i64} {
  func.func @_mlp_kernel(%arg0: i32, %arg1: memref<3x2xf32, #tpu.memory_space<vmem>>, %arg2: memref<16x3xf32, #tpu.memory_space<vmem>>, %arg3: memref<16x1xf32, #tpu.memory_space<vmem>>, %arg4: memref<16x16xf32, #tpu.memory_space<vmem>>, %arg5: memref<16x1xf32, #tpu.memory_space<vmem>>, %arg6: memref<9x2xf32, #tpu.memory_space<vmem>>) attributes {dimension_semantics = [#tpu.dimension_semantics<parallel>], iteration_bounds = array<i64: 1>, scalar_prefetch = 0 : i64, scratch_operands = 0 : i64, tpu.core_type = #tpu.core_type<tc>, window_params = [{transform_indices = @transform_0, window_bounds = array<i64: 3, 2>}, {pipeline_mode = #tpu.pipeline_mode<synchronous>, transform_indices = @transform_1, window_bounds = array<i64: 16, 3>}, {pipeline_mode = #tpu.pipeline_mode<synchronous>, transform_indices = @transform_2, window_bounds = array<i64: 16, 1>}, {pipeline_mode = #tpu.pipeline_mode<synchronous>, transform_indices = @transform_3, window_bounds = array<i64: 16, 16>}, {pipeline_mode = #tpu.pipeline_mode<synchronous>, transform_indices = @transform_4, window_bounds = array<i64: 16, 1>}, {transform_indices = @transform_5, window_bounds = array<i64: 9, 2>}]} {
    %c0 = arith.constant 0 : index
    %c0_0 = arith.constant 0 : index
    %0 = vector.load %arg1[%c0, %c0_0] : memref<3x2xf32, #tpu.memory_space<vmem>>, vector<3x2xf32>
    %c0_1 = arith.constant 0 : index
    %c0_2 = arith.constant 0 : index
    %1 = vector.load %arg2[%c0_1, %c0_2] : memref<16x3xf32, #tpu.memory_space<vmem>>, vector<16x3xf32>
    %c0_3 = arith.constant 0 : index
    %c0_4 = arith.constant 0 : index
    %2 = vector.load %arg4[%c0_3, %c0_4] : memref<16x16xf32, #tpu.memory_space<vmem>>, vector<16x16xf32>
    %c0_5 = arith.constant 0 : index
    %c0_6 = arith.constant 0 : index
    %3 = vector.load %arg3[%c0_5, %c0_6] : memref<16x1xf32, #tpu.memory_space<vmem>>, vector<16x1xf32>
    %4 = vector.extract_strided_slice %1 {offsets = [0, 0], sizes = [16, 1], strides = [1, 1]} : vector<16x3xf32> to vector<16x1xf32>
    %5 = vector.extract_strided_slice %0 {offsets = [0, 0], sizes = [1, 2], strides = [1, 1]} : vector<3x2xf32> to vector<1x2xf32>
    %6 = vector.broadcast %4 : vector<16x1xf32> to vector<16x2xf32>
    %7 = vector.broadcast %5 : vector<1x2xf32> to vector<16x2xf32>
    %8 = arith.mulf %6, %7 : vector<16x2xf32>
    %9 = vector.broadcast %3 : vector<16x1xf32> to vector<16x2xf32>
    %10 = arith.addf %9, %8 : vector<16x2xf32>
    %11 = vector.extract_strided_slice %1 {offsets = [0, 1], sizes = [16, 1], strides = [1, 1]} : vector<16x3xf32> to vector<16x1xf32>
    %12 = vector.extract_strided_slice %0 {offsets = [1, 0], sizes = [1, 2], strides = [1, 1]} : vector<3x2xf32> to vector<1x2xf32>
    %13 = vector.broadcast %11 : vector<16x1xf32> to vector<16x2xf32>
    %14 = vector.broadcast %12 : vector<1x2xf32> to vector<16x2xf32>
    %15 = arith.mulf %13, %14 : vector<16x2xf32>
    %16 = arith.addf %10, %15 : vector<16x2xf32>
    %17 = vector.extract_strided_slice %1 {offsets = [0, 2], sizes = [16, 1], strides = [1, 1]} : vector<16x3xf32> to vector<16x1xf32>
    %18 = vector.extract_strided_slice %0 {offsets = [2, 0], sizes = [1, 2], strides = [1, 1]} : vector<3x2xf32> to vector<1x2xf32>
    %19 = vector.broadcast %17 : vector<16x1xf32> to vector<16x2xf32>
    %20 = vector.broadcast %18 : vector<1x2xf32> to vector<16x2xf32>
    %21 = arith.mulf %19, %20 : vector<16x2xf32>
    %22 = arith.addf %16, %21 : vector<16x2xf32>
    %cst = arith.constant 0.000000e+00 : f32
    %23 = vector.broadcast %cst : f32 to vector<16x2xf32>
    %24 = arith.maximumf %22, %23 : vector<16x2xf32>
    %c0_7 = arith.constant 0 : index
    %c0_8 = arith.constant 0 : index
    %25 = vector.load %arg5[%c0_7, %c0_8] : memref<16x1xf32, #tpu.memory_space<vmem>>, vector<16x1xf32>
    %26 = vector.extract_strided_slice %2 {offsets = [0, 0], sizes = [16, 1], strides = [1, 1]} : vector<16x16xf32> to vector<16x1xf32>
    %27 = vector.extract_strided_slice %24 {offsets = [0, 0], sizes = [1, 2], strides = [1, 1]} : vector<16x2xf32> to vector<1x2xf32>
    %28 = vector.broadcast %26 : vector<16x1xf32> to vector<16x2xf32>
    %29 = vector.broadcast %27 : vector<1x2xf32> to vector<16x2xf32>
    %30 = arith.mulf %28, %29 : vector<16x2xf32>
    %31 = vector.broadcast %25 : vector<16x1xf32> to vector<16x2xf32>
    %32 = arith.addf %31, %30 : vector<16x2xf32>
    %33 = vector.extract_strided_slice %2 {offsets = [0, 1], sizes = [16, 1], strides = [1, 1]} : vector<16x16xf32> to vector<16x1xf32>
    %34 = vector.extract_strided_slice %24 {offsets = [1, 0], sizes = [1, 2], strides = [1, 1]} : vector<16x2xf32> to vector<1x2xf32>
    %35 = vector.broadcast %33 : vector<16x1xf32> to vector<16x2xf32>
    %36 = vector.broadcast %34 : vector<1x2xf32> to vector<16x2xf32>
    %37 = arith.mulf %35, %36 : vector<16x2xf32>
    %38 = arith.addf %32, %37 : vector<16x2xf32>
    %39 = vector.extract_strided_slice %2 {offsets = [0, 2], sizes = [16, 1], strides = [1, 1]} : vector<16x16xf32> to vector<16x1xf32>
    %40 = vector.extract_strided_slice %24 {offsets = [2, 0], sizes = [1, 2], strides = [1, 1]} : vector<16x2xf32> to vector<1x2xf32>
    %41 = vector.broadcast %39 : vector<16x1xf32> to vector<16x2xf32>
    %42 = vector.broadcast %40 : vector<1x2xf32> to vector<16x2xf32>
    %43 = arith.mulf %41, %42 : vector<16x2xf32>
    %44 = arith.addf %38, %43 : vector<16x2xf32>
    %45 = vector.extract_strided_slice %2 {offsets = [0, 3], sizes = [16, 1], strides = [1, 1]} : vector<16x16xf32> to vector<16x1xf32>
    %46 = vector.extract_strided_slice %24 {offsets = [3, 0], sizes = [1, 2], strides = [1, 1]} : vector<16x2xf32> to vector<1x2xf32>
    %47 = vector.broadcast %45 : vector<16x1xf32> to vector<16x2xf32>
    %48 = vector.broadcast %46 : vector<1x2xf32> to vector<16x2xf32>
    %49 = arith.mulf %47, %48 : vector<16x2xf32>
    %50 = arith.addf %44, %49 : vector<16x2xf32>
    %51 = vector.extract_strided_slice %2 {offsets = [0, 4], sizes = [16, 1], strides = [1, 1]} : vector<16x16xf32> to vector<16x1xf32>
    %52 = vector.extract_strided_slice %24 {offsets = [4, 0], sizes = [1, 2], strides = [1, 1]} : vector<16x2xf32> to vector<1x2xf32>
    %53 = vector.broadcast %51 : vector<16x1xf32> to vector<16x2xf32>
    %54 = vector.broadcast %52 : vector<1x2xf32> to vector<16x2xf32>
    %55 = arith.mulf %53, %54 : vector<16x2xf32>
    %56 = arith.addf %50, %55 : vector<16x2xf32>
    %57 = vector.extract_strided_slice %2 {offsets = [0, 5], sizes = [16, 1], strides = [1, 1]} : vector<16x16xf32> to vector<16x1xf32>
    %58 = vector.extract_strided_slice %24 {offsets = [5, 0], sizes = [1, 2], strides = [1, 1]} : vector<16x2xf32> to vector<1x2xf32>
    %59 = vector.broadcast %57 : vector<16x1xf32> to vector<16x2xf32>
    %60 = vector.broadcast %58 : vector<1x2xf32> to vector<16x2xf32>
    %61 = arith.mulf %59, %60 : vector<16x2xf32>
    %62 = arith.addf %56, %61 : vector<16x2xf32>
    %63 = vector.extract_strided_slice %2 {offsets = [0, 6], sizes = [16, 1], strides = [1, 1]} : vector<16x16xf32> to vector<16x1xf32>
    %64 = vector.extract_strided_slice %24 {offsets = [6, 0], sizes = [1, 2], strides = [1, 1]} : vector<16x2xf32> to vector<1x2xf32>
    %65 = vector.broadcast %63 : vector<16x1xf32> to vector<16x2xf32>
    %66 = vector.broadcast %64 : vector<1x2xf32> to vector<16x2xf32>
    %67 = arith.mulf %65, %66 : vector<16x2xf32>
    %68 = arith.addf %62, %67 : vector<16x2xf32>
    %69 = vector.extract_strided_slice %2 {offsets = [0, 7], sizes = [16, 1], strides = [1, 1]} : vector<16x16xf32> to vector<16x1xf32>
    %70 = vector.extract_strided_slice %24 {offsets = [7, 0], sizes = [1, 2], strides = [1, 1]} : vector<16x2xf32> to vector<1x2xf32>
    %71 = vector.broadcast %69 : vector<16x1xf32> to vector<16x2xf32>
    %72 = vector.broadcast %70 : vector<1x2xf32> to vector<16x2xf32>
    %73 = arith.mulf %71, %72 : vector<16x2xf32>
    %74 = arith.addf %68, %73 : vector<16x2xf32>
    %75 = vector.extract_strided_slice %2 {offsets = [0, 8], sizes = [16, 1], strides = [1, 1]} : vector<16x16xf32> to vector<16x1xf32>
    %76 = vector.extract_strided_slice %24 {offsets = [8, 0], sizes = [1, 2], strides = [1, 1]} : vector<16x2xf32> to vector<1x2xf32>
    %77 = vector.broadcast %75 : vector<16x1xf32> to vector<16x2xf32>
    %78 = vector.broadcast %76 : vector<1x2xf32> to vector<16x2xf32>
    %79 = arith.mulf %77, %78 : vector<16x2xf32>
    %80 = arith.addf %74, %79 : vector<16x2xf32>
    %81 = vector.extract_strided_slice %2 {offsets = [0, 9], sizes = [16, 1], strides = [1, 1]} : vector<16x16xf32> to vector<16x1xf32>
    %82 = vector.extract_strided_slice %24 {offsets = [9, 0], sizes = [1, 2], strides = [1, 1]} : vector<16x2xf32> to vector<1x2xf32>
    %83 = vector.broadcast %81 : vector<16x1xf32> to vector<16x2xf32>
    %84 = vector.broadcast %82 : vector<1x2xf32> to vector<16x2xf32>
    %85 = arith.mulf %83, %84 : vector<16x2xf32>
    %86 = arith.addf %80, %85 : vector<16x2xf32>
    %87 = vector.extract_strided_slice %86 {offsets = [0, 0], sizes = [9, 2], strides = [1, 1]} : vector<16x2xf32> to vector<9x2xf32>
    %c0_9 = arith.constant 0 : index
    %c0_10 = arith.constant 0 : index
    %88 = vector.load %arg6[%c0_9, %c0_10] : memref<9x2xf32, #tpu.memory_space<vmem>>, vector<9x2xf32>
    tpu.vector_store %arg6[%c0_9, %c0_10], %87 {strides = array<i32>} : memref<9x2xf32, #tpu.memory_space<vmem>>, vector<9x2xf32>,
    return
  }
  func.func @transform_0(%arg0: i32) -> (i32, i32) {
    %c0_i32 = arith.constant 0 : i32
    %c0_i32_0 = arith.constant 0 : i32
    return %c0_i32, %arg0 : i32, i32
  }
  func.func @transform_1(%arg0: i32) -> (i32, i32) {
    %c0_i32 = arith.constant 0 : i32
    %c0_i32_0 = arith.constant 0 : i32
    %c0_i32_1 = arith.constant 0 : i32
    return %c0_i32, %c0_i32_0 : i32, i32
  }
  func.func @transform_2(%arg0: i32) -> (i32, i32) {
    %c0_i32 = arith.constant 0 : i32
    %c0_i32_0 = arith.constant 0 : i32
    %c0_i32_1 = arith.constant 0 : i32
    return %c0_i32, %c0_i32_0 : i32, i32
  }
  func.func @transform_3(%arg0: i32) -> (i32, i32) {
    %c0_i32 = arith.constant 0 : i32
    %c0_i32_0 = arith.constant 0 : i32
    %c0_i32_1 = arith.constant 0 : i32
    return %c0_i32, %c0_i32_0 : i32, i32
  }
  func.func @transform_4(%arg0: i32) -> (i32, i32) {
    %c0_i32 = arith.constant 0 : i32
    %c0_i32_0 = arith.constant 0 : i32
    %c0_i32_1 = arith.constant 0 : i32
    return %c0_i32, %c0_i32_0 : i32, i32
  }
  func.func @transform_5(%arg0: i32) -> (i32, i32) {
    %c0_i32 = arith.constant 0 : i32
    %c0_i32_0 = arith.constant 0 : i32
    return %c0_i32, %arg0 : i32, i32
  }
}

</mosaic_0001>

<llo_original>
// kernel: sqn_forward_fm.1
$region0: #{sqn_forward_fm.1}
  #allocation0 [shape = 'u32[]', space=smem, size = 0x4, offset = 0x4, fixed_abs, tag = 'smem constant byte address 0x4 - core index']
  #allocation1 [shape = 'u32[72,128]{1,0:T(1,128)}', space=vmem, size = 0x9000, scoped, tag = 'internal scratch']
  %s0 = inlined_call_operand.vmem [shape: f32[3,2], index: 0, kind: input, shape index: {}]
  %s1 = inlined_call_operand.vmem [shape: f32[16,3], index: 1, kind: input, shape index: {}]
  %s2 = inlined_call_operand.vmem [shape: f32[16,1], index: 2, kind: input, shape index: {}]
  %s3 = inlined_call_operand.vmem [shape: f32[16,16], index: 3, kind: input, shape index: {}]
  %s4 = inlined_call_operand.vmem [shape: f32[16,1], index: 4, kind: input, shape index: {}]
  %s5 = inlined_call_operand.vmem [shape: f32[9,2], index: 5, kind: output, shape index: {}]
  %s6 = sld [smem:[#allocation0]]
  $region30: #{sqn_forward_fm.1} parent=0
    _
  %s8 = ssub.s32 1, %s6
  %s9 = scalar_select 0, %s8, %s6
  // Predicated region
  $region2: #{sqn_forward_fm.1} parent=0 // pred_check
    _
  $region3: #{sqn_forward_fm.1} parent=0 // pred_check_branch
    %11 = sbr.rel (0) target = $region5
  $region4: #{sqn_forward_fm.1} parent=0 // pred_region
    _
  $region5: #{sqn_forward_fm.1} parent=0 // pred_fallthru
    _
  // Predicated region
  $region6: #{sqn_forward_fm.1} parent=0 // pred_check
    _
  $region7: #{sqn_forward_fm.1} parent=0 // pred_check_branch
    %13 = sbr.rel (0) target = $region9
  $region8: #{sqn_forward_fm.1} parent=0 // pred_region
    _
  $region9: #{sqn_forward_fm.1} parent=0 // pred_fallthru
    _
  // Predicated region
  $region10: #{sqn_forward_fm.1} parent=0 // pred_check
    _
  $region11: #{sqn_forward_fm.1} parent=0 // pred_check_branch
    %15 = sbr.rel (0) target = $region13
  $region12: #{sqn_forward_fm.1} parent=0 // pred_region
    _
  $region13: #{sqn_forward_fm.1} parent=0 // pred_fallthru
    _
  // Predicated region
  $region14: #{sqn_forward_fm.1} parent=0 // pred_check
    _
  $region15: #{sqn_forward_fm.1} parent=0 // pred_check_branch
    %17 = sbr.rel (0) target = $region17
  $region16: #{sqn_forward_fm.1} parent=0 // pred_region
    _
  $region17: #{sqn_forward_fm.1} parent=0 // pred_fallthru
    _
  // Predicated region
  $region18: #{sqn_forward_fm.1} parent=0 // pred_check
    _
  $region19: #{sqn_forward_fm.1} parent=0 // pred_check_branch
    %19 = sbr.rel (0) target = $region21
  $region20: #{sqn_forward_fm.1} parent=0 // pred_region
    _
  $region21: #{sqn_forward_fm.1} parent=0 // pred_fallthru
    _
  %v20 = vld [vmem:[%s0] sm:$0x7]
  %v21 = vld [vmem:[%s1] sm:$0xff]
  %v22 = vld [vmem:[%s1 + $0x8] sm:$0xff]
  %v23 = vld [vmem:[%s3] sm:$0xff]
  %v24 = vld [vmem:[%s3 + $0x8] sm:$0xff]
  %v25 = vld [vmem:[%s2] sm:$0xff]
  %v26 = vld [vmem:[%s2 + $0x8] sm:$0xff]
  %28 = vset.pattern.permute.xlu0 0
  %29 = vperm.xlu0 %28, %v21
  %v30 = vpop.permute.xlu0 %29
  %33 = vset.pattern.permute.xlu0 0
  %34 = vperm.xlu0 %33, %v22
  %v35 = vpop.permute.xlu0 %34
  %v37 = vperm.slane %v20, 0
  %v38 = vmul.f32 %v30, %v37
  %v39 = vmul.f32 %v35, %v37
  %41 = vset.pattern.permute.xlu0 0
  %42 = vperm.xlu0 %41, %v25
  %v43 = vpop.permute.xlu0 %42
  %46 = vset.pattern.permute.xlu0 0
  %47 = vperm.xlu0 %46, %v26
  %v48 = vpop.permute.xlu0 %47
  %v50 = vadd.f32 %v43, %v38
  %v51 = vadd.f32 %v48, %v39
  %52 = vset.pattern.permute.xlu0 1
  %53 = vperm.xlu0 %52, %v21
  %v54 = vpop.permute.xlu0 %53
  %56 = vset.pattern.permute.xlu0 1
  %57 = vperm.xlu0 %56, %v22
  %v58 = vpop.permute.xlu0 %57
  %v60 = vperm.slane %v20, 1
  %v61 = vmul.f32 %v54, %v60
  %v62 = vmul.f32 %v58, %v60
  %v63 = vadd.f32 %v50, %v61
  %v64 = vadd.f32 %v51, %v62
  %65 = vset.pattern.permute.xlu0 2
  %66 = vperm.xlu0 %65, %v21
  %v67 = vpop.permute.xlu0 %66
  %69 = vset.pattern.permute.xlu0 2
  %70 = vperm.xlu0 %69, %v22
  %v71 = vpop.permute.xlu0 %70
  %v73 = vperm.slane %v20, 2
  %v74 = vmul.f32 %v67, %v73
  %v75 = vmul.f32 %v71, %v73
  %v76 = vadd.f32 %v63, %v74
  %v77 = vadd.f32 %v64, %v75
  %v78 = vmax.f32 %v76, 0.0
  %v79 = vmax.f32 %v77, 0.0
  %v80 = vld [vmem:[%s4] sm:$0xff]
  %v81 = vld [vmem:[%s4 + $0x8] sm:$0xff]
  %83 = vset.pattern.permute.xlu0 0
  %84 = vperm.xlu0 %83, %v23
  %v85 = vpop.permute.xlu0 %84
  %88 = vset.pattern.permute.xlu0 0
  %89 = vperm.xlu0 %88, %v24
  %v90 = vpop.permute.xlu0 %89
  %v92 = vperm.slane %v78, 0
  %v93 = vmul.f32 %v85, %v92
  %v94 = vmul.f32 %v90, %v92
  %96 = vset.pattern.permute.xlu0 0
  %97 = vperm.xlu0 %96, %v80
  %v98 = vpop.permute.xlu0 %97
  %101 = vset.pattern.permute.xlu0 0
  %102 = vperm.xlu0 %101, %v81
  %v103 = vpop.permute.xlu0 %102
  %v105 = vadd.f32 %v98, %v93
  %v106 = vadd.f32 %v103, %v94
  %107 = vset.pattern.permute.xlu0 1
  %108 = vperm.xlu0 %107, %v23
  %v109 = vpop.permute.xlu0 %108
  %111 = vset.pattern.permute.xlu0 1
  %112 = vperm.xlu0 %111, %v24
  %v113 = vpop.permute.xlu0 %112
  %v115 = vperm.slane %v78, 1
  %v116 = vmul.f32 %v109, %v115
  %v117 = vmul.f32 %v113, %v115
  %v118 = vadd.f32 %v105, %v116
  %v119 = vadd.f32 %v106, %v117
  %120 = vset.pattern.permute.xlu0 2
  %121 = vperm.xlu0 %120, %v23
  %v122 = vpop.permute.xlu0 %121
  %124 = vset.pattern.permute.xlu0 2
  %125 = vperm.xlu0 %124, %v24
  %v126 = vpop.permute.xlu0 %125
  %v128 = vperm.slane %v78, 2
  %v129 = vmul.f32 %v122, %v128
  %v130 = vmul.f32 %v126, %v128
  %v131 = vadd.f32 %v118, %v129
  %v132 = vadd.f32 %v119, %v130
  %133 = vset.pattern.permute.xlu0 3
  %134 = vperm.xlu0 %133, %v23
  %v135 = vpop.permute.xlu0 %134
  %137 = vset.pattern.permute.xlu0 3
  %138 = vperm.xlu0 %137, %v24
  %v139 = vpop.permute.xlu0 %138
  %v141 = vperm.slane %v78, 3
  %v142 = vmul.f32 %v135, %v141
  %v143 = vmul.f32 %v139, %v141
  %v144 = vadd.f32 %v131, %v142
  %v145 = vadd.f32 %v132, %v143
  %146 = vset.pattern.permute.xlu0 4
  %147 = vperm.xlu0 %146, %v23
  %v148 = vpop.permute.xlu0 %147
  %150 = vset.pattern.permute.xlu0 4
  %151 = vperm.xlu0 %150, %v24
  %v152 = vpop.permute.xlu0 %151
  %v154 = vperm.slane %v78, 4
  %v155 = vmul.f32 %v148, %v154
  %v156 = vmul.f32 %v152, %v154
  %v157 = vadd.f32 %v144, %v155
  %v158 = vadd.f32 %v145, %v156
  %159 = vset.pattern.permute.xlu0 5
  %160 = vperm.xlu0 %159, %v23
  %v161 = vpop.permute.xlu0 %160
  %163 = vset.pattern.permute.xlu0 5
  %164 = vperm.xlu0 %163, %v24
  %v165 = vpop.permute.xlu0 %164
  %v167 = vperm.slane %v78, 5
  %v168 = vmul.f32 %v161, %v167
  %v169 = vmul.f32 %v165, %v167
  %v170 = vadd.f32 %v157, %v168
  %v171 = vadd.f32 %v158, %v169
  %172 = vset.pattern.permute.xlu0 6
  %173 = vperm.xlu0 %172, %v23
  %v174 = vpop.permute.xlu0 %173
  %176 = vset.pattern.permute.xlu0 6
  %177 = vperm.xlu0 %176, %v24
  %v178 = vpop.permute.xlu0 %177
  %v180 = vperm.slane %v78, 6
  %v181 = vmul.f32 %v174, %v180
  %v182 = vmul.f32 %v178, %v180
  %v183 = vadd.f32 %v170, %v181
  %v184 = vadd.f32 %v171, %v182
  %185 = vset.pattern.permute.xlu0 7
  %186 = vperm.xlu0 %185, %v23
  %v187 = vpop.permute.xlu0 %186
  %189 = vset.pattern.permute.xlu0 7
  %190 = vperm.xlu0 %189, %v24
  %v191 = vpop.permute.xlu0 %190
  %v193 = vperm.slane %v78, 7
  %v194 = vmul.f32 %v187, %v193
  %v195 = vmul.f32 %v191, %v193
  %v196 = vadd.f32 %v183, %v194
  %v197 = vadd.f32 %v184, %v195
  %198 = vset.pattern.permute.xlu0 8
  %199 = vperm.xlu0 %198, %v23
  %v200 = vpop.permute.xlu0 %199
  %202 = vset.pattern.permute.xlu0 8
  %203 = vperm.xlu0 %202, %v24
  %v204 = vpop.permute.xlu0 %203
  %v206 = vperm.slane %v79, 0
  %v207 = vmul.f32 %v200, %v206
  %v208 = vmul.f32 %v204, %v206
  %v209 = vadd.f32 %v196, %v207
  %v210 = vadd.f32 %v197, %v208
  %211 = vset.pattern.permute.xlu0 9
  %212 = vperm.xlu0 %211, %v23
  %v213 = vpop.permute.xlu0 %212
  %215 = vset.pattern.permute.xlu0 9
  %216 = vperm.xlu0 %215, %v24
  %v217 = vpop.permute.xlu0 %216
  %v219 = vperm.slane %v79, 1
  %v220 = vmul.f32 %v213, %v219
  %v221 = vmul.f32 %v217, %v219
  %v222 = vadd.f32 %v209, %v220
  %v223 = vadd.f32 %v210, %v221
  %vm224 = vcmask 15360
  %225 = vst.msk [vmem:[%s5] sm:$0xff] %vm224, %v222
  %vm226 = vcmask 8192
  %227 = vst.msk [vmem:[%s5 + $0x8] sm:$0x1] %vm226, %v223
  // Predicated region
  $region22: #{sqn_forward_fm.1} parent=0 // pred_check
    _
  $region23: #{sqn_forward_fm.1} parent=0 // pred_check_branch
    %229 = sbr.rel (0) target = $region25
  $region24: #{sqn_forward_fm.1} parent=0 // pred_region
    _
  $region25: #{sqn_forward_fm.1} parent=0 // pred_fallthru
    _
  // Predicated region
  $region26: #{sqn_forward_fm.1} parent=0 // pred_check
    _
  $region27: #{sqn_forward_fm.1} parent=0 // pred_check_branch
    %231 = sbr.rel (0) target = $region29
  $region28: #{sqn_forward_fm.1} parent=0 // pred_region
    _
  $region29: #{sqn_forward_fm.1} parent=0 // pred_fallthru
    _

</llo_original>
